<compile_context>
chip_gen: v6e
topology: v6e:2x2x1
jax: 0.10.0
libtpu: 0.0.40
codegen_flags: <defaults>
</compile_context>

<pallas_src>
import math
from functools import partial

import jax
import jax.numpy as jnp
from jax.experimental import pallas as pl
from jax.experimental.pallas import tpu as pltpu


def _round_up(x, m):
    return (x + m - 1) // m * m


def _patch_embed_kernel(x_ref, w_ref, pos_ref, o_ref):
    # Single-K-tile fast path: one fused dot + add + lane-dense full-tile store.
    # x_ref:   (TM, K_pad)    bf16  zero-augmented flattened patch rows
    # w_ref:   (K_pad, E_pad) bf16  flattened conv weight (constant block)
    # pos_ref: (TM, E_pad)    f32   fused positions / cls / conv-bias (constant)
    # o_ref:   (TM, E_pad)    out dtype
    acc = jnp.dot(x_ref[...], w_ref[...], preferred_element_type=jnp.float32)
    o_ref[...] = (acc + pos_ref[...]).astype(o_ref.dtype)


def _patch_embed_kernel_ksplit(x_ref, w_ref, pos_ref, o_ref):
    # Fallback for very large K: accumulate directly into the (f32, resident)
    # output block; no scratch accumulator needed.
    k = pl.program_id(1)

    @pl.when(k == 0)
    def _():
        o_ref[...] = pos_ref[...]

    o_ref[...] += jnp.dot(x_ref[...], w_ref[...],
                          preferred_element_type=jnp.float32)


@partial(jax.jit,
         static_argnames=("patch_size", "tm_target", "tk_max", "out_dtype"))
def patch_embedding(x, conv_w, conv_b, cls_token, positions, *, patch_size,
                    tm_target=512, tk_max=2048, out_dtype=jnp.float32):
    """ViT patch embedding forward.  x: [B, C, H, W] f32 -> [B, N+1, E]."""
    B, C, H, W = x.shape
    P = patch_size
    Hn, Wn = H // P, W // P
    N = Hn * Wn
    Np1 = N + 1                                    # +1 for the cls row
    E = conv_w.shape[0]
    K = C * P * P

    # ---- lane alignment ------------------------------------------------------
    # 128-lane alignment already gives full, unmasked vst stores; rounding E up
    # to 256 (v6e/v7x MXU tile) would not reduce the number of 256-wide MXU
    # column passes and would add output bytes for e.g. E=384, so 128 is kept.
    E_pad = _round_up(E, 128)
    K_pad = _round_up(K, 128)

    # ---- K tiling: single tile unless K is huge ------------------------------
    if K_pad <= tk_max:
        TK, k_tiles = K_pad, 1
    else:
        k_tiles = -(-K_pad // tk_max)
        while K_pad % (k_tiles * 128) != 0:        # TK always divides K_pad
            k_tiles += 1
        TK = K_pad // k_tiles

    # ---- M tiling: whole images per tile, >= 2 tiles when the batch allows ---
    bpt_unit = 8 // math.gcd(Np1, 8)               # images per 8-sublane granule
    bpt = bpt_unit * max(1, tm_target // (Np1 * bpt_unit))
    half_b = _round_up(max(1, -(-B // 2)), bpt_unit)
    bpt = max(bpt_unit, min(bpt, half_b))          # keep m_tiles >= 2 (megacore)

    kernel_out_dtype = jnp.float32 if k_tiles > 1 else jnp.dtype(out_dtype)
    out_bytes = jnp.dtype(kernel_out_dtype).itemsize

    def est_vmem(tm):                              # double-buffered footprint
        return 2 * (tm * TK * 2 + TK * E_pad * 2
                    + tm * E_pad * 4 + tm * E_pad * out_bytes)

    VMEM_BUDGET = 40 * 1024 * 1024                 # headroom on v7x's 64 MiB
    while bpt > bpt_unit and est_vmem(bpt * Np1) > VMEM_BUDGET:
        bpt -= bpt_unit

    B_pad = _round_up(B, bpt)
    TM = bpt * Np1
    M_pad = B_pad * Np1
    m_tiles = B_pad // bpt

    # ---- host-side glue (jitted -> fuses into one HBM pass) ------------------
    # TODO(synk): fuse the NCHW -> (M, K) patch gather into the kernel itself
    # (grid over image tiles with an in-VMEM rearrangement) so x is read only
    # once by the pallas_call instead of by this XLA pre-pass.
    xb = x.astype(jnp.bfloat16)
    patches = xb.reshape(B, C, Hn, P, Wn, P).transpose(0, 2, 4, 1, 3, 5)
    patches = patches.reshape(B, N, K)
    # Zero "cls" patch row per image + batch / K padding in a single pad op
    # (zero widths are elided, so nothing extra moves in the aligned case).
    patches = jnp.pad(patches, ((0, B_pad - B), (1, 0), (0, K_pad - K)))
    patches = patches.reshape(M_pad, K_pad)

    w_flat = conv_w.reshape(E, K).T.astype(jnp.bfloat16)           # (K, E)
    if K_pad != K or E_pad != E:
        w_flat = jnp.pad(w_flat, ((0, K_pad - K), (0, E_pad - E)))

    # Fused per-row additive term (kept f32: v5e has no bf16 VALU):
    #   row 0     : positions[0]  + cls_token
    #   rows 1..N : positions[1:] + conv bias
    pos_f32 = positions.astype(jnp.float32)
    cls_row = pos_f32[:1] + cls_token.reshape(1, E).astype(jnp.float32)
    pat_rows = pos_f32[1:] + conv_b.astype(jnp.float32)[None, :]
    pos_img = jnp.concatenate([cls_row, pat_rows], axis=0)          # (N+1, E)
    pos_tile = jnp.tile(pos_img, (bpt, 1))                          # (TM, E)
    if E_pad != E:
        pos_tile = jnp.pad(pos_tile, ((0, 0), (0, E_pad - E)))

    # ---- pallas_call ----------------------------------------------------------
    if k_tiles == 1:
        kernel = _patch_embed_kernel
        grid = (m_tiles,)
        in_specs = [
            pl.BlockSpec((TM, K_pad), lambda m: (m, 0)),
            pl.BlockSpec((K_pad, E_pad), lambda m: (0, 0)),   # resident weight
            pl.BlockSpec((TM, E_pad), lambda m: (0, 0)),      # resident pos
        ]
        out_spec = pl.BlockSpec((TM, E_pad), lambda m: (m, 0))
        dim_sem = ("parallel",)
    else:
        kernel = _patch_embed_kernel_ksplit
        grid = (m_tiles, k_tiles)                             # reduction last
        in_specs = [
            pl.BlockSpec((TM, TK), lambda m, k: (m, k)),
            pl.BlockSpec((TK, E_pad), lambda m, k: (k, 0)),
            pl.BlockSpec((TM, E_pad), lambda m, k: (0, 0)),
        ]
        out_spec = pl.BlockSpec((TM, E_pad), lambda m, k: (m, 0))
        dim_sem = ("parallel", "arbitrary")

    proj = pl.pallas_call(
        kernel,
        out_shape=jax.ShapeDtypeStruct((M_pad, E_pad), kernel_out_dtype),
        grid_spec=pltpu.PrefetchScalarGridSpec(
            num_scalar_prefetch=0,
            grid=grid,
            in_specs=in_specs,
            out_specs=out_spec,
        ),
        compiler_params=pltpu.CompilerParams(
            dimension_semantics=dim_sem,
            vmem_limit_bytes=48 * 1024 * 1024),
    )(patches, w_flat, pos_tile)

    # Free reshape to the final [B, N+1, E] layout; slice only if padded.
    seq = proj.reshape(B_pad, Np1, E_pad)
    if B_pad != B or E_pad != E:
        seq = seq[:B, :, :E]
    return seq.astype(out_dtype)


def reference(x, conv_w, conv_b, cls_token, positions, patch_size):
    """Pure-JAX f32 reference mirroring the PyTorch forward."""
    B, C, H, W = x.shape
    P = patch_size
    Hn, Wn = H // P, W // P
    E = conv_w.shape[0]
    patches = x.reshape(B, C, Hn, P, Wn, P).transpose(0, 2, 4, 1, 3, 5)
    patches = patches.reshape(B, Hn * Wn, C * P * P)
    proj = patches @ conv_w.reshape(E, -1).T + conv_b                # [B, N, E]
    cls = jnp.broadcast_to(cls_token.reshape(1, 1, E), (B, 1, E))
    seq = jnp.concatenate([cls, proj], axis=1)
    return seq + positions[None]


if __name__ == "__main__":
    # Small shapes consistent with the module: image 16x16, patch 4, C=4, E=32.
    image_size, patch_size, in_channels, embed_dim = 16, 4, 4, 32
    batch = 2
    num_patches = (image_size // patch_size) ** 2

    key = jax.random.PRNGKey(0)
    k_x, k_w, k_b, k_cls, k_pos = jax.random.split(key, 5)

    x = jax.random.normal(k_x, (batch, in_channels, image_size, image_size),
                          dtype=jnp.float32)
    conv_w = jax.random.normal(
        k_w, (embed_dim, in_channels, patch_size, patch_size),
        dtype=jnp.float32) * 0.02
    conv_b = jax.random.normal(k_b, (embed_dim,), dtype=jnp.float32) * 0.02
    cls_token = jax.random.normal(k_cls, (1, 1, embed_dim), dtype=jnp.float32)
    positions = jax.random.normal(k_pos, (num_patches + 1, embed_dim),
                                  dtype=jnp.float32)

    out = patch_embedding(x, conv_w, conv_b, cls_token, positions,
                          patch_size=patch_size)
    out = jax.block_until_ready(out)

    ref = reference(x, conv_w, conv_b, cls_token, positions, patch_size)
    assert out.shape == (batch, num_patches + 1, embed_dim)
    max_err = float(jnp.max(jnp.abs(out - ref)))
    # bf16 MXU operands with f32 accumulation -> tolerance loosened vs f32 ref.
    assert jnp.allclose(out, ref, atol=2e-2, rtol=2e-2), f"max err {max_err}"

    print("KERNEL_OK")
</pallas_src>

<mosaic_0001>
module attributes {stable_mosaic.version = 11 : i64} {
  func.func @_patch_embed_kernel(%arg0: i32, %arg1: memref<136x128xbf16, #tpu.memory_space<vmem>>, %arg2: memref<128x128xbf16, #tpu.memory_space<vmem>>, %arg3: memref<136x128xf32, #tpu.memory_space<vmem>>, %arg4: memref<136x128xf32, #tpu.memory_space<vmem>>) attributes {dimension_semantics = [#tpu.dimension_semantics<parallel>], iteration_bounds = array<i64: 1>, scalar_prefetch = 0 : i64, scratch_operands = 0 : i64, tpu.core_type = #tpu.core_type<tc>, window_params = [{transform_indices = @transform_0, window_bounds = array<i64: 136, 128>}, {pipeline_mode = #tpu.pipeline_mode<synchronous>, transform_indices = @transform_1, window_bounds = array<i64: 128, 128>}, {pipeline_mode = #tpu.pipeline_mode<synchronous>, transform_indices = @transform_2, window_bounds = array<i64: 136, 128>}, {transform_indices = @transform_3, window_bounds = array<i64: 136, 128>}]} {
    %c0 = arith.constant 0 : index
    %c0_0 = arith.constant 0 : index
    %0 = vector.load %arg1[%c0, %c0_0] : memref<136x128xbf16, #tpu.memory_space<vmem>>, vector<136x128xbf16>
    %c0_1 = arith.constant 0 : index
    %c0_2 = arith.constant 0 : index
    %1 = vector.load %arg2[%c0_1, %c0_2] : memref<128x128xbf16, #tpu.memory_space<vmem>>, vector<128x128xbf16>
    %cst = arith.constant dense<0.000000e+00> : vector<136x128xf32>
    %2 = tpu.matmul %0, %1, %cst {dimension_numbers = #tpu.dot_dimension_numbers<[1], [0], [0], [1], [0, 0, 1, 1], [], []>} : vector<136x128xbf16>, vector<128x128xbf16>, vector<136x128xf32> -> vector<136x128xf32>
    %c0_3 = arith.constant 0 : index
    %c0_4 = arith.constant 0 : index
    %3 = vector.load %arg3[%c0_3, %c0_4] : memref<136x128xf32, #tpu.memory_space<vmem>>, vector<136x128xf32>
    %4 = arith.addf %2, %3 : vector<136x128xf32>
    %c0_5 = arith.constant 0 : index
    %c0_6 = arith.constant 0 : index
    %5 = vector.load %arg4[%c0_5, %c0_6] : memref<136x128xf32, #tpu.memory_space<vmem>>, vector<136x128xf32>
    tpu.vector_store %arg4[%c0_5, %c0_6], %4 {strides = array<i32>} : memref<136x128xf32, #tpu.memory_space<vmem>>, vector<136x128xf32>,
    return
  }
  func.func @transform_0(%arg0: i32) -> (i32, i32) {
    %c0_i32 = arith.constant 0 : i32
    %c0_i32_0 = arith.constant 0 : i32
    return %arg0, %c0_i32 : i32, i32
  }
  func.func @transform_1(%arg0: i32) -> (i32, i32) {
    %c0_i32 = arith.constant 0 : i32
    %c0_i32_0 = arith.constant 0 : i32
    %c0_i32_1 = arith.constant 0 : i32
    return %c0_i32, %c0_i32_0 : i32, i32
  }
  func.func @transform_2(%arg0: i32) -> (i32, i32) {
    %c0_i32 = arith.constant 0 : i32
    %c0_i32_0 = arith.constant 0 : i32
    %c0_i32_1 = arith.constant 0 : i32
    return %c0_i32, %c0_i32_0 : i32, i32
  }
  func.func @transform_3(%arg0: i32) -> (i32, i32) {
    %c0_i32 = arith.constant 0 : i32
    %c0_i32_0 = arith.constant 0 : i32
    return %arg0, %c0_i32 : i32, i32
  }
}

</mosaic_0001>

<llo_original>
// kernel: tile.9
$region0: #{tile.9}
  %s0 = inlined_call_operand.vmem [shape: f32[8,17,32], index: 0, kind: input, shape index: {}]
  %s1 = inlined_call_operand.vmem [shape: f32[136,32], index: 1, kind: output, shape index: {}]
  %v2 = vld [vmem:[%s0] ss:$8 sm:$0xf]
  %v3 = vld [vmem:[%s0] ss:$8 sm:$0xf0]
  %vm4 = vcmask 1047556
  %v5 = vsel %vm4, %v3, %v2
  %vm6 = vcmask 138240
  %7 = vst.msk [vmem:[%s1] sm:$0xff] %vm6, %v5
  %s8 = scalar_lea.vmem %s0, 64
  %v9 = vld [vmem:[%s8] ss:$8 sm:$0xf]
  %s10 = scalar_lea.vmem %s0, 64
  %v11 = vld [vmem:[%s10] ss:$8 sm:$0xf0]
  %vm12 = vcmask 1047556
  %v13 = vsel %vm12, %v11, %v9
  %vm14 = vcmask 138240
  %s15 = scalar_lea.vmem %s1, 16
  %16 = vst.msk [vmem:[%s15] sm:$0xff] %vm14, %v13
  %s17 = scalar_lea.vmem %s0, 128
  %v18 = vld [vmem:[%s17] ss:$8 sm:$0xf]
  %s19 = scalar_lea.vmem %s0, 128
  %v20 = vld [vmem:[%s19] ss:$8 sm:$0xf0]
  %vm21 = vcmask 1047556
  %v22 = vsel %vm21, %v20, %v18
  %vm23 = vcmask 138240
  %s24 = scalar_lea.vmem %s1, 32
  %25 = vst.msk [vmem:[%s24] sm:$0xff] %vm23, %v22
  %s26 = scalar_lea.vmem %s0, 192
  %v27 = vld [vmem:[%s26] ss:$8 sm:$0xf]
  %s28 = scalar_lea.vmem %s0, 192
  %v29 = vld [vmem:[%s28] ss:$8 sm:$0xf0]
  %vm30 = vcmask 1047556
  %v31 = vsel %vm30, %v29, %v27
  %vm32 = vcmask 138240
  %s33 = scalar_lea.vmem %s1, 48
  %34 = vst.msk [vmem:[%s33] sm:$0xff] %vm32, %v31
  %s35 = scalar_lea.vmem %s0, 7
  %v36 = vld [vmem:[%s35] ss:$8 sm:$0xf]
  %s37 = scalar_lea.vmem %s0, 7
  %v38 = vld [vmem:[%s37] ss:$8 sm:$0xf0]
  %vm39 = vcmask 1047556
  %v40 = vsel %vm39, %v38, %v36
  %s41 = scalar_lea.vmem %s0, 7
  %v42 = vld [vmem:[%s41] ss:$8 sm:$0xf]
  %s43 = scalar_lea.vmem %s0, 7
  %v44 = vld [vmem:[%s43] ss:$8 sm:$0xf0]
  %vm45 = vcmask 1047556
  %v46 = vsel %vm45, %v44, %v42
  %vm47 = vcmask 72704
  %v48 = vsel %vm47, %v46, %v40
  %49 = vrot.lane.b32.xlu0 %v48, 119
  %v50 = vpop.permute.xlu0 %49
  %vm51 = vcmask 64512
  %s52 = scalar_lea.vmem %s1, 8
  %53 = vst.msk [vmem:[%s52] sm:$0xff] %vm51, %v50
  %vm54 = vcmask 1048504
  %55 = vst.msk [vmem:[%s1] sm:$0xff] %vm54, %v50
  %s56 = scalar_lea.vmem %s0, 135
  %v57 = vld [vmem:[%s56] ss:$8 sm:$0xf]
  %s58 = scalar_lea.vmem %s0, 135
  %v59 = vld [vmem:[%s58] ss:$8 sm:$0xf0]
  %vm60 = vcmask 1047556
  %v61 = vsel %vm60, %v59, %v57
  %s62 = scalar_lea.vmem %s0, 135
  %v63 = vld [vmem:[%s62] ss:$8 sm:$0xf]
  %s64 = scalar_lea.vmem %s0, 135
  %v65 = vld [vmem:[%s64] ss:$8 sm:$0xf0]
  %vm66 = vcmask 1047556
  %v67 = vsel %vm66, %v65, %v63
  %vm68 = vcmask 72704
  %v69 = vsel %vm68, %v67, %v61
  %70 = vrot.lane.b32.xlu0 %v69, 119
  %v71 = vpop.permute.xlu0 %70
  %vm72 = vcmask 64512
  %s73 = scalar_lea.vmem %s1, 40
  %74 = vst.msk [vmem:[%s73] sm:$0xff] %vm72, %v71
  %vm75 = vcmask 1048504
  %s76 = scalar_lea.vmem %s1, 32
  %77 = vst.msk [vmem:[%s76] sm:$0xff] %vm75, %v71
  %s78 = scalar_lea.vmem %s0, 71
  %v79 = vld [vmem:[%s78] ss:$8 sm:$0xf]
  %s80 = scalar_lea.vmem %s0, 71
  %v81 = vld [vmem:[%s80] ss:$8 sm:$0xf0]
  %vm82 = vcmask 1047556
  %v83 = vsel %vm82, %v81, %v79
  %s84 = scalar_lea.vmem %s0, 71
  %v85 = vld [vmem:[%s84] ss:$8 sm:$0xf]
  %s86 = scalar_lea.vmem %s0, 71
  %v87 = vld [vmem:[%s86] ss:$8 sm:$0xf0]
  %vm88 = vcmask 1047556
  %v89 = vsel %vm88, %v87, %v85
  %vm90 = vcmask 72704
  %v91 = vsel %vm90, %v89, %v83
  %92 = vrot.lane.b32.xlu0 %v91, 119
  %v93 = vpop.permute.xlu0 %92
  %vm94 = vcmask 64512
  %s95 = scalar_lea.vmem %s1, 24
  %96 = vst.msk [vmem:[%s95] sm:$0xff] %vm94, %v93
  %vm97 = vcmask 1048504
  %s98 = scalar_lea.vmem %s1, 16
  %99 = vst.msk [vmem:[%s98] sm:$0xff] %vm97, %v93
  %s100 = scalar_lea.vmem %s0, 199
  %v101 = vld [vmem:[%s100] ss:$8 sm:$0xf]
  %s102 = scalar_lea.vmem %s0, 199
  %v103 = vld [vmem:[%s102] ss:$8 sm:$0xf0]
  %vm104 = vcmask 1047556
  %v105 = vsel %vm104, %v103, %v101
  %s106 = scalar_lea.vmem %s0, 199
  %v107 = vld [vmem:[%s106] ss:$8 sm:$0xf]
  %s108 = scalar_lea.vmem %s0, 199
  %v109 = vld [vmem:[%s108] ss:$8 sm:$0xf0]
  %vm110 = vcmask 1047556
  %v111 = vsel %vm110, %v109, %v107
  %vm112 = vcmask 72704
  %v113 = vsel %vm112, %v111, %v105
  %114 = vrot.lane.b32.xlu0 %v113, 119
  %v115 = vpop.permute.xlu0 %114
  %vm116 = vcmask 64512
  %s117 = scalar_lea.vmem %s1, 56
  %118 = vst.msk [vmem:[%s117] sm:$0xff] %vm116, %v115
  %vm119 = vcmask 1048504
  %s120 = scalar_lea.vmem %s1, 48
  %121 = vst.msk [vmem:[%s120] sm:$0xff] %vm119, %v115
  %s122 = scalar_lea.vmem %s0, 6
  %v123 = vld [vmem:[%s122] ss:$8 sm:$0xf]
  %s124 = scalar_lea.vmem %s0, 6
  %v125 = vld [vmem:[%s124] ss:$8 sm:$0xf0]
  %vm126 = vcmask 1047556
  %v127 = vsel %vm126, %v125, %v123
  %128 = vrot.lane.b32.xlu0 %v127, 102
  %v129 = vpop.permute.xlu0 %128
  %vm130 = vcmask 974640
  %131 = vst.msk [vmem:[%s1] sm:$0xff] %vm130, %v129
  %s132 = scalar_lea.vmem %s0, 134
  %v133 = vld [vmem:[%s132] ss:$8 sm:$0xf]
  %s134 = scalar_lea.vmem %s0, 134
  %v135 = vld [vmem:[%s134] ss:$8 sm:$0xf0]
  %vm136 = vcmask 1047556
  %v137 = vsel %vm136, %v135, %v133
  %138 = vrot.lane.b32.xlu0 %v137, 102
  %v139 = vpop.permute.xlu0 %138
  %vm140 = vcmask 974640
  %s141 = scalar_lea.vmem %s1, 32
  %142 = vst.msk [vmem:[%s141] sm:$0xff] %vm140, %v139
  %s143 = scalar_lea.vmem %s0, 70
  %v144 = vld [vmem:[%s143] ss:$8 sm:$0xf]
  %s145 = scalar_lea.vmem %s0, 70
  %v146 = vld [vmem:[%s145] ss:$8 sm:$0xf0]
  %vm147 = vcmask 1047556
  %v148 = vsel %vm147, %v146, %v144
  %149 = vrot.lane.b32.xlu0 %v148, 102
  %v150 = vpop.permute.xlu0 %149
  %vm151 = vcmask 974640
  %s152 = scalar_lea.vmem %s1, 16
  %153 = vst.msk [vmem:[%s152] sm:$0xff] %vm151, %v150
  %s154 = scalar_lea.vmem %s0, 198
  %v155 = vld [vmem:[%s154] ss:$8 sm:$0xf]
  %s156 = scalar_lea.vmem %s0, 198
  %v157 = vld [vmem:[%s156] ss:$8 sm:$0xf0]
  %vm158 = vcmask 1047556
  %v159 = vsel %vm158, %v157, %v155
  %160 = vrot.lane.b32.xlu0 %v159, 102
  %v161 = vpop.permute.xlu0 %160
  %vm162 = vcmask 974640
  %s163 = scalar_lea.vmem %s1, 48
  %164 = vst.msk [vmem:[%s163] sm:$0xff] %vm162, %v161
  %s165 = scalar_lea.vmem %s0, 5
  %v166 = vld [vmem:[%s165] ss:$8 sm:$0xf]
  %s167 = scalar_lea.vmem %s0, 5
  %v168 = vld [vmem:[%s167] ss:$8 sm:$0xf0]
  %vm169 = vcmask 1047556
  %v170 = vsel %vm169, %v168, %v166
  %171 = vrot.lane.b32.xlu0 %v170, 85
  %v172 = vpop.permute.xlu0 %171
  %vm173 = vcmask 835240
  %174 = vst.msk [vmem:[%s1] sm:$0xff] %vm173, %v172
  %s175 = scalar_lea.vmem %s0, 133
  %v176 = vld [vmem:[%s175] ss:$8 sm:$0xf]
  %s177 = scalar_lea.vmem %s0, 133
  %v178 = vld [vmem:[%s177] ss:$8 sm:$0xf0]
  %vm179 = vcmask 1047556
  %v180 = vsel %vm179, %v178, %v176
  %181 = vrot.lane.b32.xlu0 %v180, 85
  %v182 = vpop.permute.xlu0 %181
  %vm183 = vcmask 835240
  %s184 = scalar_lea.vmem %s1, 32
  %185 = vst.msk [vmem:[%s184] sm:$0xff] %vm183, %v182
  %s186 = scalar_lea.vmem %s0, 69
  %v187 = vld [vmem:[%s186] ss:$8 sm:$0xf]
  %s188 = scalar_lea.vmem %s0, 69
  %v189 = vld [vmem:[%s188] ss:$8 sm:$0xf0]
  %vm190 = vcmask 1047556
  %v191 = vsel %vm190, %v189, %v187
  %192 = vrot.lane.b32.xlu0 %v191, 85
  %v193 = vpop.permute.xlu0 %192
  %vm194 = vcmask 835240
  %s195 = scalar_lea.vmem %s1, 16
  %196 = vst.msk [vmem:[%s195] sm:$0xff] %vm194, %v193
  %s197 = scalar_lea.vmem %s0, 197
  %v198 = vld [vmem:[%s197] ss:$8 sm:$0xf]
  %s199 = scalar_lea.vmem %s0, 197
  %v200 = vld [vmem:[%s199] ss:$8 sm:$0xf0]
  %vm201 = vcmask 1047556
  %v202 = vsel %vm201, %v200, %v198
  %203 = vrot.lane.b32.xlu0 %v202, 85
  %v204 = vpop.permute.xlu0 %203
  %vm205 = vcmask 835240
  %s206 = scalar_lea.vmem %s1, 48
  %207 = vst.msk [vmem:[%s206] sm:$0xff] %vm205, %v204
  %s208 = scalar_lea.vmem %s0, 4
  %v209 = vld [vmem:[%s208] ss:$8 sm:$0xf]
  %s210 = scalar_lea.vmem %s0, 4
  %v211 = vld [vmem:[%s210] ss:$8 sm:$0xf0]
  %vm212 = vcmask 1047556
  %v213 = vsel %vm212, %v211, %v209
  %214 = vrot.lane.b32.xlu0 %v213, 68
  %v215 = vpop.permute.xlu0 %214
  %vm216 = vcmask 695840
  %217 = vst.msk [vmem:[%s1] sm:$0xff] %vm216, %v215
  %s218 = scalar_lea.vmem %s0, 132
  %v219 = vld [vmem:[%s218] ss:$8 sm:$0xf]
  %s220 = scalar_lea.vmem %s0, 132
  %v221 = vld [vmem:[%s220] ss:$8 sm:$0xf0]
  %vm222 = vcmask 1047556
  %v223 = vsel %vm222, %v221, %v219
  %224 = vrot.lane.b32.xlu0 %v223, 68
  %v225 = vpop.permute.xlu0 %224
  %vm226 = vcmask 695840
  %s227 = scalar_lea.vmem %s1, 32
  %228 = vst.msk [vmem:[%s227] sm:$0xff] %vm226, %v225
  %s229 = scalar_lea.vmem %s0, 68
  %v230 = vld [vmem:[%s229] ss:$8 sm:$0xf]
  %s231 = scalar_lea.vmem %s0, 68
  %v232 = vld [vmem:[%s231] ss:$8 sm:$0xf0]
  %vm233 = vcmask 1047556
  %v234 = vsel %vm233, %v232, %v230
  %235 = vrot.lane.b32.xlu0 %v234, 68
  %v236 = vpop.permute.xlu0 %235
  %vm237 = vcmask 695840
  %s238 = scalar_lea.vmem %s1, 16
  %239 = vst.msk [vmem:[%s238] sm:$0xff] %vm237, %v236
  %s240 = scalar_lea.vmem %s0, 196
  %v241 = vld [vmem:[%s240] ss:$8 sm:$0xf]
  %s242 = scalar_lea.vmem %s0, 196
  %v243 = vld [vmem:[%s242] ss:$8 sm:$0xf0]
  %vm244 = vcmask 1047556
  %v245 = vsel %vm244, %v243, %v241
  %246 = vrot.lane.b32.xlu0 %v245, 68
  %v247 = vpop.permute.xlu0 %246
  %vm248 = vcmask 695840
  %s249 = scalar_lea.vmem %s1, 48
  %250 = vst.msk [vmem:[%s249] sm:$0xff] %vm248, %v247
  %s251 = scalar_lea.vmem %s0, 3
  %v252 = vld [vmem:[%s251] ss:$8 sm:$0xf]
  %s253 = scalar_lea.vmem %s0, 3
  %v254 = vld [vmem:[%s253] ss:$8 sm:$0xf0]
  %vm255 = vcmask 1047556
  %v256 = vsel %vm255, %v254, %v252
  %257 = vrot.lane.b32.xlu0 %v256, 51
  %v258 = vpop.permute.xlu0 %257
  %vm259 = vcmask 556440
  %260 = vst.msk [vmem:[%s1] sm:$0xff] %vm259, %v258
  %s261 = scalar_lea.vmem %s0, 131
  %v262 = vld [vmem:[%s261] ss:$8 sm:$0xf]
  %s263 = scalar_lea.vmem %s0, 131
  %v264 = vld [vmem:[%s263] ss:$8 sm:$0xf0]
  %vm265 = vcmask 1047556
  %v266 = vsel %vm265, %v264, %v262
  %267 = vrot.lane.b32.xlu0 %v266, 51
  %v268 = vpop.permute.xlu0 %267
  %vm269 = vcmask 556440
  %s270 = scalar_lea.vmem %s1, 32
  %271 = vst.msk [vmem:[%s270] sm:$0xff] %vm269, %v268
  %s272 = scalar_lea.vmem %s0, 67
  %v273 = vld [vmem:[%s272] ss:$8 sm:$0xf]
  %s274 = scalar_lea.vmem %s0, 67
  %v275 = vld [vmem:[%s274] ss:$8 sm:$0xf0]
  %vm276 = vcmask 1047556
  %v277 = vsel %vm276, %v275, %v273
  %278 = vrot.lane.b32.xlu0 %v277, 51
  %v279 = vpop.permute.xlu0 %278
  %vm280 = vcmask 556440
  %s281 = scalar_lea.vmem %s1, 16
  %282 = vst.msk [vmem:[%s281] sm:$0xff] %vm280, %v279
  %s283 = scalar_lea.vmem %s0, 195
  %v284 = vld [vmem:[%s283] ss:$8 sm:$0xf]
  %s285 = scalar_lea.vmem %s0, 195
  %v286 = vld [vmem:[%s285] ss:$8 sm:$0xf0]
  %vm287 = vcmask 1047556
  %v288 = vsel %vm287, %v286, %v284
  %289 = vrot.lane.b32.xlu0 %v288, 51
  %v290 = vpop.permute.xlu0 %289
  %vm291 = vcmask 556440
  %s292 = scalar_lea.vmem %s1, 48
  %293 = vst.msk [vmem:[%s292] sm:$0xff] %vm291, %v290
  %s294 = scalar_lea.vmem %s0, 2
  %v295 = vld [vmem:[%s294] ss:$8 sm:$0xf]
  %s296 = scalar_lea.vmem %s0, 2
  %v297 = vld [vmem:[%s296] ss:$8 sm:$0xf0]
  %vm298 = vcmask 1047556
  %v299 = vsel %vm298, %v297, %v295
  %300 = vrot.lane.b32.xlu0 %v299, 34
  %v301 = vpop.permute.xlu0 %300
  %vm302 = vcmask 417040
  %303 = vst.msk [vmem:[%s1] sm:$0xff] %vm302, %v301
  %s304 = scalar_lea.vmem %s0, 130
  %v305 = vld [vmem:[%s304] ss:$8 sm:$0xf]
  %s306 = scalar_lea.vmem %s0, 130
  %v307 = vld [vmem:[%s306] ss:$8 sm:$0xf0]
  %vm308 = vcmask 1047556
  %v309 = vsel %vm308, %v307, %v305
  %310 = vrot.lane.b32.xlu0 %v309, 34
  %v311 = vpop.permute.xlu0 %310
  %vm312 = vcmask 417040
  %s313 = scalar_lea.vmem %s1, 32
  %314 = vst.msk [vmem:[%s313] sm:$0xff] %vm312, %v311
  %s315 = scalar_lea.vmem %s0, 66
  %v316 = vld [vmem:[%s315] ss:$8 sm:$0xf]
  %s317 = scalar_lea.vmem %s0, 66
  %v318 = vld [vmem:[%s317] ss:$8 sm:$0xf0]
  %vm319 = vcmask 1047556
  %v320 = vsel %vm319, %v318, %v316
  %321 = vrot.lane.b32.xlu0 %v320, 34
  %v322 = vpop.permute.xlu0 %321
  %vm323 = vcmask 417040
  %s324 = scalar_lea.vmem %s1, 16
  %325 = vst.msk [vmem:[%s324] sm:$0xff] %vm323, %v322
  %s326 = scalar_lea.vmem %s0, 194
  %v327 = vld [vmem:[%s326] ss:$8 sm:$0xf]
  %s328 = scalar_lea.vmem %s0, 194
  %v329 = vld [vmem:[%s328] ss:$8 sm:$0xf0]
  %vm330 = vcmask 1047556
  %v331 = vsel %vm330, %v329, %v327
  %332 = vrot.lane.b32.xlu0 %v331, 34
  %v333 = vpop.permute.xlu0 %332
  %vm334 = vcmask 417040
  %s335 = scalar_lea.vmem %s1, 48
  %336 = vst.msk [vmem:[%s335] sm:$0xff] %vm334, %v333
  %s337 = scalar_lea.vmem %s0, 1
  %v338 = vld [vmem:[%s337] ss:$8 sm:$0xf]
  %s339 = scalar_lea.vmem %s0, 1
  %v340 = vld [vmem:[%s339] ss:$8 sm:$0xf0]
  %vm341 = vcmask 1047556
  %v342 = vsel %vm341, %v340, %v338
  %343 = vrot.lane.b32.xlu0 %v342, 17
  %v344 = vpop.permute.xlu0 %343
  %vm345 = vcmask 277640
  %346 = vst.msk [vmem:[%s1] sm:$0xff] %vm345, %v344
  %s347 = scalar_lea.vmem %s0, 129
  %v348 = vld [vmem:[%s347] ss:$8 sm:$0xf]
  %s349 = scalar_lea.vmem %s0, 129
  %v350 = vld [vmem:[%s349] ss:$8 sm:$0xf0]
  %vm351 = vcmask 1047556
  %v352 = vsel %vm351, %v350, %v348
  %353 = vrot.lane.b32.xlu0 %v352, 17
  %v354 = vpop.permute.xlu0 %353
  %vm355 = vcmask 277640
  %s356 = scalar_lea.vmem %s1, 32
  %357 = vst.msk [vmem:[%s356] sm:$0xff] %vm355, %v354
  %s358 = scalar_lea.vmem %s0, 65
  %v359 = vld [vmem:[%s358] ss:$8 sm:$0xf]
  %s360 = scalar_lea.vmem %s0, 65
  %v361 = vld [vmem:[%s360] ss:$8 sm:$0xf0]
  %vm362 = vcmask 1047556
  %v363 = vsel %vm362, %v361, %v359
  %364 = vrot.lane.b32.xlu0 %v363, 17
  %v365 = vpop.permute.xlu0 %364
  %vm366 = vcmask 277640
  %s367 = scalar_lea.vmem %s1, 16
  %368 = vst.msk [vmem:[%s367] sm:$0xff] %vm366, %v365
  %s369 = scalar_lea.vmem %s0, 193
  %v370 = vld [vmem:[%s369] ss:$8 sm:$0xf]
  %s371 = scalar_lea.vmem %s0, 193
  %v372 = vld [vmem:[%s371] ss:$8 sm:$0xf0]
  %vm373 = vcmask 1047556
  %v374 = vsel %vm373, %v372, %v370
  %375 = vrot.lane.b32.xlu0 %v374, 17
  %v376 = vpop.permute.xlu0 %375
  %vm377 = vcmask 277640
  %s378 = scalar_lea.vmem %s1, 48
  %379 = vst.msk [vmem:[%s378] sm:$0xff] %vm377, %v376

// kernel: patch_embedding.1
$region0: #{patch_embedding.1}
  #allocation0 [shape = 'u32[]', space=smem, size = 0x4, offset = 0x4, fixed_abs, tag = 'smem constant byte address 0x4 - core index']
  #allocation1 [shape = 'u32[144,128]{1,0:T(1,128)}', space=vmem, size = 0x12000, scoped, tag = 'internal scratch']
  %s0 = inlined_call_operand.vmem [shape: bf16[136,128], index: 0, kind: input, shape index: {}]
  %s1 = inlined_call_operand.vmem [shape: bf16[128,128], index: 1, kind: input, shape index: {}]
  %s2 = inlined_call_operand.vmem [shape: f32[136,128], index: 2, kind: input, shape index: {}]
  %s3 = inlined_call_operand.vmem [shape: f32[136,128], index: 3, kind: output, shape index: {}]
  %s4 = sld [smem:[#allocation0]]
  $region22: #{patch_embedding.1} parent=0
    _
  %s6 = ssub.s32 1, %s4
  %s7 = scalar_select 0, %s6, %s4
  // Predicated region
  $region2: #{patch_embedding.1} parent=0 // pred_check
    _
  $region3: #{patch_embedding.1} parent=0 // pred_check_branch
    %9 = sbr.rel (0) target = $region5
  $region4: #{patch_embedding.1} parent=0 // pred_region
    _
  $region5: #{patch_embedding.1} parent=0 // pred_fallthru
    _
  // Predicated region
  $region6: #{patch_embedding.1} parent=0 // pred_check
    _
  $region7: #{patch_embedding.1} parent=0 // pred_check_branch
    %11 = sbr.rel (0) target = $region9
  $region8: #{patch_embedding.1} parent=0 // pred_region
    _
  $region9: #{patch_embedding.1} parent=0 // pred_fallthru
    _
  // Predicated region
  $region10: #{patch_embedding.1} parent=0 // pred_check
    _
  $region11: #{patch_embedding.1} parent=0 // pred_check_branch
    %13 = sbr.rel (0) target = $region13
  $region12: #{patch_embedding.1} parent=0 // pred_region
    _
  $region13: #{patch_embedding.1} parent=0 // pred_fallthru
    _
  %v15 = vld [vmem:[%s0] sm:$0xf]
  %v16 = vld [vmem:[%s0 + $0x4] sm:$0xf]
  %v17 = vld [vmem:[%s0 + $0x8] sm:$0xf]
  %v18 = vld [vmem:[%s0 + $0xc] sm:$0xf]
  %v19 = vld [vmem:[%s0 + $0x10] sm:$0xf]
  %v20 = vld [vmem:[%s0 + $0x14] sm:$0xf]
  %v21 = vld [vmem:[%s0 + $0x18] sm:$0xf]
  %v22 = vld [vmem:[%s0 + $0x1c] sm:$0xf]
  %v23 = vld [vmem:[%s0 + $0x20] sm:$0xf]
  %v24 = vld [vmem:[%s0 + $0x24] sm:$0xf]
  %v25 = vld [vmem:[%s0 + $0x28] sm:$0xf]
  %v26 = vld [vmem:[%s0 + $0x2c] sm:$0xf]
  %v27 = vld [vmem:[%s0 + $0x30] sm:$0xf]
  %v28 = vld [vmem:[%s0 + $0x34] sm:$0xf]
  %v29 = vld [vmem:[%s0 + $0x38] sm:$0xf]
  %v30 = vld [vmem:[%s0 + $0x3c] sm:$0xf]
  %v31 = vld [vmem:[%s0 + $0x40] sm:$0xf]
  %v32 = vld [vmem:[%s1] sm:$0xf]
  %v33 = vld [vmem:[%s1 + $0x4] sm:$0xf]
  %v34 = vld [vmem:[%s1 + $0x8] sm:$0xf]
  %v35 = vld [vmem:[%s1 + $0xc] sm:$0xf]
  %v36 = vld [vmem:[%s1 + $0x10] sm:$0xf]
  %v37 = vld [vmem:[%s1 + $0x14] sm:$0xf]
  %v38 = vld [vmem:[%s1 + $0x18] sm:$0xf]
  %v39 = vld [vmem:[%s1 + $0x1c] sm:$0xf]
  %v40 = vld [vmem:[%s1 + $0x20] sm:$0xf]
  %v41 = vld [vmem:[%s1 + $0x24] sm:$0xf]
  %v42 = vld [vmem:[%s1 + $0x28] sm:$0xf]
  %v43 = vld [vmem:[%s1 + $0x2c] sm:$0xf]
  %v44 = vld [vmem:[%s1 + $0x30] sm:$0xf]
  %v45 = vld [vmem:[%s1 + $0x34] sm:$0xf]
  %v46 = vld [vmem:[%s1 + $0x38] sm:$0xf]
  %v47 = vld [vmem:[%s1 + $0x3c] sm:$0xf]
  %v48 = vld [vmem:[%s2] sm:$0xff]
  %v49 = vld [vmem:[%s2 + $0x8] sm:$0xff]
  %v50 = vld [vmem:[%s2 + $0x10] sm:$0xff]
  %v51 = vld [vmem:[%s2 + $0x18] sm:$0xff]
  %v52 = vld [vmem:[%s2 + $0x20] sm:$0xff]
  %v53 = vld [vmem:[%s2 + $0x28] sm:$0xff]
  %v54 = vld [vmem:[%s2 + $0x30] sm:$0xff]
  %v55 = vld [vmem:[%s2 + $0x38] sm:$0xff]
  %v56 = vld [vmem:[%s2 + $0x40] sm:$0xff]
  %v57 = vld [vmem:[%s2 + $0x48] sm:$0xff]
  %v58 = vld [vmem:[%s2 + $0x50] sm:$0xff]
  %v59 = vld [vmem:[%s2 + $0x58] sm:$0xff]
  %v60 = vld [vmem:[%s2 + $0x60] sm:$0xff]
  %v61 = vld [vmem:[%s2 + $0x68] sm:$0xff]
  %v62 = vld [vmem:[%s2 + $0x70] sm:$0xff]
  %v63 = vld [vmem:[%s2 + $0x78] sm:$0xff]
  %v64 = vld [vmem:[%s2 + $0x80] sm:$0xff]
  %v82 = vunpack.c.l.b16 %v15
  %v83 = vunpack.c.l.b16 %v16
  %v84 = vunpack.c.l.b16 %v17
  %v85 = vunpack.c.l.b16 %v18
  %v86 = vunpack.c.l.b16 %v19
  %v87 = vunpack.c.l.b16 %v20
  %v88 = vunpack.c.l.b16 %v21
  %v89 = vunpack.c.l.b16 %v22
  %v90 = vunpack.c.l.b16 %v23
  %v91 = vunpack.c.l.b16 %v24
  %v92 = vunpack.c.l.b16 %v25
  %v93 = vunpack.c.l.b16 %v26
  %v94 = vunpack.c.l.b16 %v27
  %v95 = vunpack.c.l.b16 %v28
  %v96 = vunpack.c.l.b16 %v29
  %v97 = vunpack.c.l.b16 %v30
  %v98 = vunpack.c.l.b16 %v31
  %v99 = vpack.c.b16 %v83, %v82
  %v100 = vpack.c.b16 %v85, %v84
  %v101 = vpack.c.b16 %v87, %v86
  %v102 = vpack.c.b16 %v89, %v88
  %v103 = vpack.c.b16 %v91, %v90
  %v104 = vpack.c.b16 %v93, %v92
  %v105 = vpack.c.b16 %v95, %v94
  %v106 = vpack.c.b16 %v97, %v96
  %v107 = vpack.c.b16 %v98, %v98
  %v133 = vunpack.c.l.b16 %v32
  %v134 = vunpack.c.l.b16 %v33
  %v135 = vunpack.c.l.b16 %v34
  %v136 = vunpack.c.l.b16 %v35
  %v137 = vunpack.c.l.b16 %v36
  %v138 = vunpack.c.l.b16 %v37
  %v139 = vunpack.c.l.b16 %v38
  %v140 = vunpack.c.l.b16 %v39
  %v141 = vunpack.c.l.b16 %v40
  %v142 = vunpack.c.l.b16 %v41
  %v143 = vunpack.c.l.b16 %v42
  %v144 = vunpack.c.l.b16 %v43
  %v145 = vunpack.c.l.b16 %v44
  %v146 = vunpack.c.l.b16 %v45
  %v147 = vunpack.c.l.b16 %v46
  %v148 = vunpack.c.l.b16 %v47
  %v149 = vpack.c.b16 %v134, %v133
  %v150 = vpack.c.b16 %v136, %v135
  %v151 = vpack.c.b16 %v138, %v137
  %v152 = vpack.c.b16 %v140, %v139
  %v153 = vpack.c.b16 %v142, %v141
  %v154 = vpack.c.b16 %v144, %v143
  %v155 = vpack.c.b16 %v146, %v145
  %v156 = vpack.c.b16 %v148, %v147
  %165 = vmatprep.subr.bf16.mxu0 0
  %166 = vmatpush1.bf16.msra.mxu0 %v156
  %167 = vmatprep.subr.bf16.mxu0 0
  %168 = vmatpush1.bf16.msra.mxu0 %v155
  %169 = vmatprep.subr.bf16.mxu0 0
  %170 = vmatpush1.bf16.msra.mxu0 %v154
  %171 = vmatprep.subr.bf16.mxu0 0
  %172 = vmatpush1.bf16.msra.mxu0 %v153
  %173 = vmatprep.subr.bf16.mxu0 0
  %174 = vmatpush1.bf16.msra.mxu0 %v152
  %175 = vmatprep.subr.bf16.mxu0 0
  %176 = vmatpush1.bf16.msra.mxu0 %v151
  %177 = vmatprep.subr.bf16.mxu0 0
  %178 = vmatpush1.bf16.msra.mxu0 %v150
  %179 = vmatprep.subr.bf16.mxu0 0
  %180 = vmatpush1.bf16.msra.mxu0 %v149
  %181 = vmatprep.subr.bf16.mxu0 0
  %182 = vmatpush2.bf16.msra.mxu0 0
  %183 = vmatprep.subr.bf16.mxu0 0
  %184 = vmatpush2.bf16.msra.mxu0 0
  %185 = vmatprep.subr.bf16.mxu0 0
  %186 = vmatpush2.bf16.msra.mxu0 0
  %187 = vmatprep.subr.bf16.mxu0 0
  %188 = vmatpush2.bf16.msra.mxu0 0
  %189 = vmatprep.subr.bf16.mxu0 0
  %190 = vmatpush2.bf16.msra.mxu0 0
  %191 = vmatprep.subr.bf16.mxu0 0
  %192 = vmatpush2.bf16.msra.mxu0 0
  %193 = vmatprep.subr.bf16.mxu0 0
  %194 = vmatpush2.bf16.msra.mxu0 0
  %195 = vmatprep.subr.bf16.mxu0 0
  %196 = vmatpush2.bf16.msra.mxu0 0
  %197 = vmatprep.mubr.bf16.mxu0 0
  %198 = vmatmul.mubr.bf16.gmra.mxu0 %v99
  %v199 = vpop.f32.mrf.mxu0
  %v200 = vadd.f32 %v48, %v199
  %v201 = vpop.f32.mrf.mxu0
  %v202 = vpop.f32.mrf.mxu0
  %v203 = vadd.f32 %v49, %v202
  %v204 = vpop.f32.mrf.mxu0
  %205 = vmatprep.mubr.bf16.mxu0 0
  %206 = vmatmul.mubr.bf16.gmra.mxu0 %v100
  %v207 = vpop.f32.mrf.mxu0
  %v208 = vadd.f32 %v50, %v207
  %v209 = vpop.f32.mrf.mxu0
  %v210 = vpop.f32.mrf.mxu0
  %v211 = vadd.f32 %v51, %v210
  %v212 = vpop.f32.mrf.mxu0
  %213 = vmatprep.mubr.bf16.mxu0 0
  %214 = vmatmul.mubr.bf16.gmra.mxu0 %v101
  %v215 = vpop.f32.mrf.mxu0
  %v216 = vadd.f32 %v52, %v215
  %v217 = vpop.f32.mrf.mxu0
  %v218 = vpop.f32.mrf.mxu0
  %v219 = vadd.f32 %v53, %v218
  %v220 = vpop.f32.mrf.mxu0
  %221 = vmatprep.mubr.bf16.mxu0 0
  %222 = vmatmul.mubr.bf16.gmra.mxu0 %v102
  %v223 = vpop.f32.mrf.mxu0
  %v224 = vadd.f32 %v54, %v223
  %v225 = vpop.f32.mrf.mxu0
  %v226 = vpop.f32.mrf.mxu0
  %v227 = vadd.f32 %v55, %v226
  %v228 = vpop.f32.mrf.mxu0
  %229 = vmatprep.mubr.bf16.mxu0 0
  %230 = vmatmul.mubr.bf16.gmra.mxu0 %v103
  %v231 = vpop.f32.mrf.mxu0
  %v232 = vadd.f32 %v56, %v231
  %v233 = vpop.f32.mrf.mxu0
  %v234 = vpop.f32.mrf.mxu0
  %v235 = vadd.f32 %v57, %v234
  %v236 = vpop.f32.mrf.mxu0
  %237 = vmatprep.mubr.bf16.mxu0 0
  %238 = vmatmul.mubr.bf16.gmra.mxu0 %v104
  %v239 = vpop.f32.mrf.mxu0
  %v240 = vadd.f32 %v58, %v239
  %v241 = vpop.f32.mrf.mxu0
  %v242 = vpop.f32.mrf.mxu0
  %v243 = vadd.f32 %v59, %v242
  %v244 = vpop.f32.mrf.mxu0
  %245 = vmatprep.mubr.bf16.mxu0 0
  %246 = vmatmul.mubr.bf16.gmra.mxu0 %v105
  %v247 = vpop.f32.mrf.mxu0
  %v248 = vadd.f32 %v60, %v247
  %v249 = vpop.f32.mrf.mxu0
  %v250 = vpop.f32.mrf.mxu0
  %v251 = vadd.f32 %v61, %v250
  %v252 = vpop.f32.mrf.mxu0
  %253 = vmatprep.mubr.bf16.mxu0 0
  %254 = vmatmul.mubr.bf16.gmra.mxu0 %v106
  %v255 = vpop.f32.mrf.mxu0
  %v256 = vadd.f32 %v62, %v255
  %v257 = vpop.f32.mrf.mxu0
  %v258 = vpop.f32.mrf.mxu0
  %v259 = vadd.f32 %v63, %v258
  %v260 = vpop.f32.mrf.mxu0
  %261 = vmatprep.mubr.bf16.mxu0 0
  %262 = vmatmul.mubr.bf16.gmra.mxu0 %v107
  %v263 = vpop.f32.mrf.mxu0
  %v264 = vadd.f32 %v64, %v263
  %v265 = vpop.f32.mrf.mxu0
  %v266 = vpop.f32.mrf.mxu0
  %v267 = vpop.f32.mrf.mxu0
  %268 = vdwg.mxu0
  %269 = vst [vmem:[%s3] sm:$0xff] %v200
  %270 = vst [vmem:[%s3 + $0x8] sm:$0xff] %v203
  %271 = vst [vmem:[%s3 + $0x10] sm:$0xff] %v208
  %272 = vst [vmem:[%s3 + $0x18] sm:$0xff] %v211
  %273 = vst [vmem:[%s3 + $0x20] sm:$0xff] %v216
  %274 = vst [vmem:[%s3 + $0x28] sm:$0xff] %v219
  %275 = vst [vmem:[%s3 + $0x30] sm:$0xff] %v224
  %276 = vst [vmem:[%s3 + $0x38] sm:$0xff] %v227
  %277 = vst [vmem:[%s3 + $0x40] sm:$0xff] %v232
  %278 = vst [vmem:[%s3 + $0x48] sm:$0xff] %v235
  %279 = vst [vmem:[%s3 + $0x50] sm:$0xff] %v240
  %280 = vst [vmem:[%s3 + $0x58] sm:$0xff] %v243
  %281 = vst [vmem:[%s3 + $0x60] sm:$0xff] %v248
  %282 = vst [vmem:[%s3 + $0x68] sm:$0xff] %v251
  %283 = vst [vmem:[%s3 + $0x70] sm:$0xff] %v256
  %284 = vst [vmem:[%s3 + $0x78] sm:$0xff] %v259
  %285 = vst [vmem:[%s3 + $0x80] sm:$0xff] %v264
  // Predicated region
  $region14: #{patch_embedding.1} parent=0 // pred_check
    _
  $region15: #{patch_embedding.1} parent=0 // pred_check_branch
    %287 = sbr.rel (0) target = $region17
  $region16: #{patch_embedding.1} parent=0 // pred_region
    _
  $region17: #{patch_embedding.1} parent=0 // pred_fallthru
    _
  // Predicated region
  $region18: #{patch_embedding.1} parent=0 // pred_check
    _
  $region19: #{patch_embedding.1} parent=0 // pred_check_branch
    %289 = sbr.rel (0) target = $region21
  $region20: #{patch_embedding.1} parent=0 // pred_region
    _
  $region21: #{patch_embedding.1} parent=0 // pred_fallthru
    _

</llo_original>
